<compile_context>
chip_gen: v7x
topology: tpu7x:2x2x1
jax: 0.10.0
libtpu: 0.0.40
codegen_flags: <defaults>
</compile_context>

<pallas_src>
from functools import partial

import jax
import jax.numpy as jnp
from jax.experimental import pallas as pl
from jax.experimental.pallas import tpu as pltpu

NUM_FEATURES = 8   # x.reshape(1, 8, 1) in forward() forces in_channels == 8
EMB_DIM = 2
MAX_B_TILE = 512   # lanes per grid step for large batches

# Column layout of the packed (8, 128) parameter slab.
CONV_W_COL = 0                      # packed[:, 0]              conv weight (8,)
CONV_B_COL = 1                      # packed[0, 1]              conv bias
ALPHA1_COL = 2                      # packed[0, 2]              PReLU #1 alpha
ALPHA2_COL = 3                      # packed[0, 3]              PReLU #2 alpha
FC1_W_COL = 4                       # packed[:, 4]              Linear(1,8) weight (8,)
FC1_B_COL = 5                       # packed[:, 5]              Linear(1,8) bias   (8,)
FC2_W_COL = 6                       # packed[:, 6:6+EMB_DIM]    Linear(8,emb) weight (8,emb)
FC2_B_COL = FC2_W_COL + EMB_DIM     # packed[0, 8:8+EMB_DIM]    Linear(8,emb) bias (emb,)


def network_kernel(x_ref, p_ref, out_ref):
    """x_ref: (8, B_TILE) features-major block; p_ref: (8, 128) packed params;
    out_ref: (EMB_DIM, B_TILE)."""
    x = x_ref[...]                                            # (8, Bt)

    # ---- parameter slices (static, tiny, hoisted once per grid step) ----
    cw = p_ref[:, CONV_W_COL:CONV_W_COL + 1]                  # (8, 1)
    cb = p_ref[0:1, CONV_B_COL:CONV_B_COL + 1]                # (1, 1)
    a1 = p_ref[0:1, ALPHA1_COL:ALPHA1_COL + 1]                # (1, 1)
    a2 = p_ref[0:1, ALPHA2_COL:ALPHA2_COL + 1]                # (1, 1)
    w1 = p_ref[:, FC1_W_COL:FC1_W_COL + 1]                    # (8, 1)
    b1 = p_ref[:, FC1_B_COL:FC1_B_COL + 1]                    # (8, 1)

    # ---- Conv1d(8, 1, k=1) on a length-1 sequence: dot over channels ----
    y = jnp.sum(x * cw, axis=0, keepdims=True) + cb           # (1, Bt)

    # ---- PReLU #1 (single shared alpha) ----
    y = jnp.where(y >= 0.0, y, a1 * y)                        # (1, Bt)

    # ---- Dropout(0.3): identity in inference mode ----
    # TODO(synk): training-mode dropout (stochastic masking) not implemented.

    # ---- Linear(1, 8): scalar input per sample -> broadcast FMA ----
    h = y * w1 + b1                                           # (8, Bt)

    # ---- PReLU #2 ----
    h = jnp.where(h >= 0.0, h, a2 * h)                        # (8, Bt)

    # ---- Linear(8, EMB_DIM) on the VPU (16 MACs; MXU not worth it) ----
    rows = []
    for n in range(EMB_DIM):                                  # static unroll
        w2n = p_ref[:, FC2_W_COL + n:FC2_W_COL + n + 1]       # (8, 1)
        b2n = p_ref[0:1, FC2_B_COL + n:FC2_B_COL + n + 1]     # (1, 1)
        rows.append(jnp.sum(h * w2n, axis=0, keepdims=True) + b2n)  # (1, Bt)
    out_ref[...] = jnp.concatenate(rows, axis=0).astype(out_ref.dtype)


def init_params(key):
    """Deterministic synthetic parameters (PyTorch-equivalent shapes)."""
    ks = jax.random.split(key, 6)
    return dict(
        # Conv1d(8, 1, 1): weight (1, 8, 1) -> stored squeezed as (1, 8)
        conv_w=jax.random.normal(ks[0], (1, NUM_FEATURES), jnp.float32) * 0.1,
        conv_b=jax.random.normal(ks[1], (1, 1), jnp.float32) * 0.1,
        prelu1=jnp.full((1, 1), 0.25, jnp.float32),   # nn.PReLU() default init
        # Linear(1, 8): weight (8, 1) -> stored transposed as (1, 8)
        fc1_w=jax.random.normal(ks[2], (1, 8), jnp.float32) * 0.1,
        fc1_b=jax.random.normal(ks[3], (1, 8), jnp.float32) * 0.1,
        prelu2=jnp.full((1, 1), 0.25, jnp.float32),
        # Linear(8, emb_dim): weight (emb_dim, 8) -> stored transposed as (8, emb_dim)
        fc2_w=jax.random.normal(ks[4], (8, EMB_DIM), jnp.float32) * 0.1,
        fc2_b=jax.random.normal(ks[5], (1, EMB_DIM), jnp.float32) * 0.1,
    )


def pack_params(params):
    """Pack every parameter into a single (8, 128) f32 slab (one vreg, one DMA)."""
    p = jnp.zeros((NUM_FEATURES, 128), jnp.float32)
    p = p.at[:, CONV_W_COL].set(params["conv_w"].reshape(NUM_FEATURES))
    p = p.at[0, CONV_B_COL].set(params["conv_b"].reshape(()))
    p = p.at[0, ALPHA1_COL].set(params["prelu1"].reshape(()))
    p = p.at[0, ALPHA2_COL].set(params["prelu2"].reshape(()))
    p = p.at[:, FC1_W_COL].set(params["fc1_w"].reshape(NUM_FEATURES))
    p = p.at[:, FC1_B_COL].set(params["fc1_b"].reshape(NUM_FEATURES))
    p = p.at[:, FC2_W_COL:FC2_W_COL + EMB_DIM].set(
        params["fc2_w"].reshape(NUM_FEATURES, EMB_DIM))
    p = p.at[0, FC2_B_COL:FC2_B_COL + EMB_DIM].set(
        params["fc2_b"].reshape(EMB_DIM))
    return p


@partial(jax.jit, static_argnames=("b_tile",))
def _network_forward_jit(x, packed_params, b_tile):
    """x: (B, 8) f32. Returns (B, EMB_DIM). b_tile is a static multiple of 128."""
    batch = x.shape[0]
    b_pad = ((batch + b_tile - 1) // b_tile) * b_tile

    # Features on sublanes, batch on lanes (lane-dense compute & stores).
    x_t = jnp.pad(x.T, ((0, 0), (0, b_pad - batch)))          # (8, b_pad)

    grid = (b_pad // b_tile,)
    out_t = pl.pallas_call(
        network_kernel,
        out_shape=jax.ShapeDtypeStruct((EMB_DIM, b_pad), jnp.float32),
        grid_spec=pltpu.PrefetchScalarGridSpec(
            num_scalar_prefetch=0,
            grid=grid,
            in_specs=[
                pl.BlockSpec((NUM_FEATURES, b_tile), lambda i: (0, i)),
                pl.BlockSpec((NUM_FEATURES, 128), lambda i: (0, 0)),  # resident
            ],
            out_specs=pl.BlockSpec((EMB_DIM, b_tile), lambda i: (0, i)),
        ),
        compiler_params=pltpu.CompilerParams(
            dimension_semantics=("parallel",),
            vmem_limit_bytes=32 * 1024 * 1024,
        ),
    )(x_t, packed_params)

    return out_t[:, :batch].T                                  # (B, EMB_DIM)


def network_forward_batched(x, packed_params):
    """Vectorized forward: each row of x (B, 8) is one independent invocation
    of the PyTorch forward(). Returns (B, EMB_DIM)."""
    x = jnp.asarray(x).reshape(-1, NUM_FEATURES).astype(jnp.float32)
    batch = x.shape[0]
    # Adaptive tile: small batches -> one minimally padded 128-lane tile,
    # big batches -> 512-lane tiles (fewer grid steps, ~0.35us/step overhead).
    b_tile = min(MAX_B_TILE, max(128, ((batch + 127) // 128) * 128))
    return _network_forward_jit(x, packed_params, b_tile)


def network_forward(x, packed_params):
    """Exact PyTorch semantics: x.reshape(1, 8, 1) -> (1, EMB_DIM)."""
    return network_forward_batched(jnp.asarray(x).reshape(1, NUM_FEATURES),
                                   packed_params)


def network_reference(x, params):
    """Pure-JAX reference (row-batched version of the PyTorch forward)."""
    x2 = jnp.asarray(x).reshape(-1, NUM_FEATURES).astype(jnp.float32)  # (B, 8)
    y = x2 @ params["conv_w"].reshape(NUM_FEATURES, 1) + params["conv_b"].reshape(1, 1)
    y = jnp.where(y >= 0.0, y, params["prelu1"].reshape(()) * y)
    h = y * params["fc1_w"].reshape(1, 8) + params["fc1_b"].reshape(1, 8)
    h = jnp.where(h >= 0.0, h, params["prelu2"].reshape(()) * h)
    return h @ params["fc2_w"].reshape(8, EMB_DIM) + params["fc2_b"].reshape(1, EMB_DIM)


if __name__ == "__main__":
    key = jax.random.PRNGKey(0)
    k_x, k_b, k_p = jax.random.split(key, 3)
    params = init_params(k_p)
    packed = pack_params(params)

    # 1) Single-sample path, mirroring forward()'s hard x.reshape(1, 8, 1).
    x1 = jax.random.normal(k_x, (1, NUM_FEATURES, 1), jnp.float32)
    out1 = jax.block_until_ready(network_forward(x1, packed))
    ref1 = network_reference(x1, params)
    assert out1.shape == (1, EMB_DIM)
    assert jnp.allclose(out1, ref1, atol=1e-5, rtol=1e-5), (out1, ref1)

    # 2) Batched path (512 independent samples -> one 512-lane grid step).
    B = 512
    xb = jax.random.normal(k_b, (B, NUM_FEATURES), jnp.float32)
    outb = jax.block_until_ready(network_forward_batched(xb, packed))
    refb = network_reference(xb, params)
    assert outb.shape == (B, EMB_DIM)
    assert jnp.allclose(outb, refb, atol=1e-5, rtol=1e-5)

    # 3) Non-multiple-of-tile batch (exercises padding path).
    xo = jax.random.normal(k_x, (100, NUM_FEATURES), jnp.float32)
    outo = jax.block_until_ready(network_forward_batched(xo, packed))
    refo = network_reference(xo, params)
    assert outo.shape == (100, EMB_DIM)
    assert jnp.allclose(outo, refo, atol=1e-5, rtol=1e-5)

    print("KERNEL_OK")
</pallas_src>

<mosaic_0001>
module attributes {stable_mosaic.version = 11 : i64} {
  func.func @network_kernel(%arg0: i32, %arg1: memref<8x128xf32, #tpu.memory_space<vmem>>, %arg2: memref<8x128xf32, #tpu.memory_space<vmem>>, %arg3: memref<2x128xf32, #tpu.memory_space<vmem>>) attributes {dimension_semantics = [#tpu.dimension_semantics<parallel>], iteration_bounds = array<i64: 1>, scalar_prefetch = 0 : i64, scratch_operands = 0 : i64, tpu.core_type = #tpu.core_type<tc>, window_params = [{transform_indices = @transform_0, window_bounds = array<i64: 8, 128>}, {pipeline_mode = #tpu.pipeline_mode<synchronous>, transform_indices = @transform_1, window_bounds = array<i64: 8, 128>}, {transform_indices = @transform_2, window_bounds = array<i64: 2, 128>}]} {
    %c0 = arith.constant 0 : index
    %c0_0 = arith.constant 0 : index
    %0 = vector.load %arg1[%c0, %c0_0] : memref<8x128xf32, #tpu.memory_space<vmem>>, vector<8x128xf32>
    %c0_1 = arith.constant 0 : index
    %c0_2 = arith.constant 0 : index
    %1 = vector.load %arg2[%c0_1, %c0_2] : memref<8x128xf32, #tpu.memory_space<vmem>>, vector<8x1xf32>
    %c0_3 = arith.constant 0 : index
    %c1 = arith.constant 1 : index
    %2 = vector.load %arg2[%c0_3, %c1] : memref<8x128xf32, #tpu.memory_space<vmem>>, vector<1x1xf32>
    %c0_4 = arith.constant 0 : index
    %c2 = arith.constant 2 : index
    %3 = vector.load %arg2[%c0_4, %c2] : memref<8x128xf32, #tpu.memory_space<vmem>>, vector<1x1xf32>
    %c0_5 = arith.constant 0 : index
    %c3 = arith.constant 3 : index
    %4 = vector.load %arg2[%c0_5, %c3] : memref<8x128xf32, #tpu.memory_space<vmem>>, vector<1x1xf32>
    %c0_6 = arith.constant 0 : index
    %c4 = arith.constant 4 : index
    %5 = vector.load %arg2[%c0_6, %c4] : memref<8x128xf32, #tpu.memory_space<vmem>>, vector<8x1xf32>
    %c0_7 = arith.constant 0 : index
    %c5 = arith.constant 5 : index
    %6 = vector.load %arg2[%c0_7, %c5] : memref<8x128xf32, #tpu.memory_space<vmem>>, vector<8x1xf32>
    %7 = vector.broadcast %1 : vector<8x1xf32> to vector<8x128xf32>
    %8 = arith.mulf %0, %7 : vector<8x128xf32>
    %cst = arith.constant dense<0.000000e+00> : vector<128xf32>
    %9 = vector.multi_reduction <add>, %8, %cst [0] : vector<8x128xf32> to vector<128xf32>
    %10 = vector.shape_cast %9 : vector<128xf32> to vector<1x128xf32>
    %11 = vector.broadcast %2 : vector<1x1xf32> to vector<1x128xf32>
    %12 = arith.addf %10, %11 : vector<1x128xf32>
    %cst_8 = arith.constant 0.000000e+00 : f32
    %13 = vector.broadcast %cst_8 : f32 to vector<1x128xf32>
    %14 = arith.cmpf oge, %12, %13 : vector<1x128xf32>
    %15 = vector.broadcast %3 : vector<1x1xf32> to vector<1x128xf32>
    %16 = arith.mulf %15, %12 : vector<1x128xf32>
    %17 = arith.select %14, %12, %16 : vector<1x128xi1>, vector<1x128xf32>
    %18 = vector.broadcast %17 : vector<1x128xf32> to vector<8x128xf32>
    %19 = vector.broadcast %5 : vector<8x1xf32> to vector<8x128xf32>
    %20 = arith.mulf %18, %19 : vector<8x128xf32>
    %21 = vector.broadcast %6 : vector<8x1xf32> to vector<8x128xf32>
    %22 = arith.addf %20, %21 : vector<8x128xf32>
    %cst_9 = arith.constant 0.000000e+00 : f32
    %23 = vector.broadcast %cst_9 : f32 to vector<8x128xf32>
    %24 = arith.cmpf oge, %22, %23 : vector<8x128xf32>
    %25 = vector.broadcast %4 : vector<1x1xf32> to vector<8x128xf32>
    %26 = arith.mulf %25, %22 : vector<8x128xf32>
    %27 = arith.select %24, %22, %26 : vector<8x128xi1>, vector<8x128xf32>
    %c0_10 = arith.constant 0 : index
    %c6 = arith.constant 6 : index
    %28 = vector.load %arg2[%c0_10, %c6] : memref<8x128xf32, #tpu.memory_space<vmem>>, vector<8x1xf32>
    %c0_11 = arith.constant 0 : index
    %c8 = arith.constant 8 : index
    %29 = vector.load %arg2[%c0_11, %c8] : memref<8x128xf32, #tpu.memory_space<vmem>>, vector<1x1xf32>
    %30 = vector.broadcast %28 : vector<8x1xf32> to vector<8x128xf32>
    %31 = arith.mulf %27, %30 : vector<8x128xf32>
    %cst_12 = arith.constant dense<0.000000e+00> : vector<128xf32>
    %32 = vector.multi_reduction <add>, %31, %cst_12 [0] : vector<8x128xf32> to vector<128xf32>
    %33 = vector.shape_cast %32 : vector<128xf32> to vector<1x128xf32>
    %34 = vector.broadcast %29 : vector<1x1xf32> to vector<1x128xf32>
    %35 = arith.addf %33, %34 : vector<1x128xf32>
    %c0_13 = arith.constant 0 : index
    %c7 = arith.constant 7 : index
    %36 = vector.load %arg2[%c0_13, %c7] : memref<8x128xf32, #tpu.memory_space<vmem>>, vector<8x1xf32>
    %c0_14 = arith.constant 0 : index
    %c9 = arith.constant 9 : index
    %37 = vector.load %arg2[%c0_14, %c9] : memref<8x128xf32, #tpu.memory_space<vmem>>, vector<1x1xf32>
    %38 = vector.broadcast %36 : vector<8x1xf32> to vector<8x128xf32>
    %39 = arith.mulf %27, %38 : vector<8x128xf32>
    %cst_15 = arith.constant dense<0.000000e+00> : vector<128xf32>
    %40 = vector.multi_reduction <add>, %39, %cst_15 [0] : vector<8x128xf32> to vector<128xf32>
    %41 = vector.shape_cast %40 : vector<128xf32> to vector<1x128xf32>
    %42 = vector.broadcast %37 : vector<1x1xf32> to vector<1x128xf32>
    %43 = arith.addf %41, %42 : vector<1x128xf32>
    %44 = tpu.concatenate %35, %43 in 0 : vector<1x128xf32>, vector<1x128xf32> -> vector<2x128xf32>
    %c0_16 = arith.constant 0 : index
    %c0_17 = arith.constant 0 : index
    %45 = vector.load %arg3[%c0_16, %c0_17] : memref<2x128xf32, #tpu.memory_space<vmem>>, vector<2x128xf32>
    tpu.vector_store %arg3[%c0_16, %c0_17], %44 {strides = array<i32>} : memref<2x128xf32, #tpu.memory_space<vmem>>, vector<2x128xf32>,
    return
  }
  func.func @transform_0(%arg0: i32) -> (i32, i32) {
    %c0_i32 = arith.constant 0 : i32
    %c0_i32_0 = arith.constant 0 : i32
    return %c0_i32, %arg0 : i32, i32
  }
  func.func @transform_1(%arg0: i32) -> (i32, i32) {
    %c0_i32 = arith.constant 0 : i32
    %c0_i32_0 = arith.constant 0 : i32
    %c0_i32_1 = arith.constant 0 : i32
    return %c0_i32, %c0_i32_0 : i32, i32
  }
  func.func @transform_2(%arg0: i32) -> (i32, i32) {
    %c0_i32 = arith.constant 0 : i32
    %c0_i32_0 = arith.constant 0 : i32
    return %c0_i32, %arg0 : i32, i32
  }
}

</mosaic_0001>

<llo_original>
// kernel: _network_forward_jit.1
$region0: #{_network_forward_jit.1}
  #allocation0 [shape = 'u32[]', space=smem, size = 0x4, offset = 0x4, fixed_abs, tag = 'smem constant byte address 0x4 - core index']
  #allocation1 [shape = 'u32[144,128]{1,0:T(1,128)}', space=vmem, size = 0x12000, scoped, tag = 'internal scratch']
  %s0 = inlined_call_operand.vmem [shape: f32[8,128], index: 0, kind: input, shape index: {}]
  %s1 = inlined_call_operand.vmem [shape: f32[8,128], index: 1, kind: input, shape index: {}]
  %s2 = inlined_call_operand.vmem [shape: f32[2,128], index: 2, kind: output, shape index: {}]
  %s3 = sld [smem:[#allocation0]]
  $region18: #{_network_forward_jit.1} parent=0
    _
  %s5 = ssub.s32 1, %s3
  %s6 = scalar_select 0, %s5, %s3
  // Predicated region
  $region2: #{_network_forward_jit.1} parent=0 // pred_check
    _
  $region3: #{_network_forward_jit.1} parent=0 // pred_check_branch
    %8 = sbr.rel (0) target = $region5
  $region4: #{_network_forward_jit.1} parent=0 // pred_region
    _
  $region5: #{_network_forward_jit.1} parent=0 // pred_fallthru
    _
  // Predicated region
  $region6: #{_network_forward_jit.1} parent=0 // pred_check
    _
  $region7: #{_network_forward_jit.1} parent=0 // pred_check_branch
    %10 = sbr.rel (0) target = $region9
  $region8: #{_network_forward_jit.1} parent=0 // pred_region
    _
  $region9: #{_network_forward_jit.1} parent=0 // pred_fallthru
    _
  %v11 = vld [vmem:[%s0] sm:$0xff]
  %v12 = vld [vmem:[%s1] sm:$0xff]
  %v13 = vld [vmem:[%s1] sm:$0x1]
  %15 = vset.pattern.permute.xlu0 0
  %16 = vperm.xlu0 %15, %v12
  %v17 = vpop.permute.xlu0 %16
  %v19 = vmul.f32 %v11, %v17
  %v20 = vrot.slane %v19, 4
  %v21 = vadd.f32 %v19, %v20
  %v22 = vrot.slane %v21, 2
  %v23 = vadd.f32 %v21, %v22
  %v24 = vrot.slane %v23, 1
  %v25 = vadd.f32 %v23, %v24
  %27 = vset.pattern.permute.xlu0 1
  %28 = vperm.xlu0 %27, %v13
  %v29 = vpop.permute.xlu0 %28
  %v31 = vadd.f32 %v25, %v29
  %vm32 = vcmp.ge.f32.partialorder %v31, 0.0
  %33 = vset.pattern.permute.xlu0 2
  %34 = vperm.xlu0 %33, %v13
  %v35 = vpop.permute.xlu0 %34
  %v37 = vmul.f32 %v35, %v31
  %v38 = vsel %vm32, %v31, %v37
  %v39 = vlaneseq
  %v40 = vshrl.u32 %v39, 7
  %v41 = vsub.s32 0, %v40
  %v42 = vrot.slane %v38, %v41
  %43 = vset.pattern.permute.xlu0 4
  %44 = vperm.xlu0 %43, %v12
  %v45 = vpop.permute.xlu0 %44
  %v47 = vmul.f32 %v42, %v45
  %48 = vset.pattern.permute.xlu0 5
  %49 = vperm.xlu0 %48, %v12
  %v50 = vpop.permute.xlu0 %49
  %v52 = vadd.f32 %v47, %v50
  %vm53 = vcmp.ge.f32.partialorder %v52, 0.0
  %54 = vrot.lane.b32.xlu0 %v13, 125
  %v55 = vpop.permute.xlu0 %54
  %s56 = vtos %v55
  %v57 = vstv %s56
  %v59 = vmul.f32 %v57, %v52
  %v60 = vsel %vm53, %v52, %v59
  %61 = vset.pattern.permute.xlu0 6
  %62 = vperm.xlu0 %61, %v12
  %v63 = vpop.permute.xlu0 %62
  %v65 = vmul.f32 %v60, %v63
  %v66 = vrot.slane %v65, 4
  %v67 = vadd.f32 %v65, %v66
  %v68 = vrot.slane %v67, 2
  %v69 = vadd.f32 %v67, %v68
  %v70 = vrot.slane %v69, 1
  %v71 = vadd.f32 %v69, %v70
  %72 = vset.pattern.permute.xlu0 8
  %73 = vperm.xlu0 %72, %v13
  %v74 = vpop.permute.xlu0 %73
  %v76 = vadd.f32 %v71, %v74
  %77 = vset.pattern.permute.xlu0 7
  %78 = vperm.xlu0 %77, %v12
  %v79 = vpop.permute.xlu0 %78
  %v81 = vmul.f32 %v60, %v79
  %v82 = vrot.slane %v81, 4
  %v83 = vadd.f32 %v81, %v82
  %v84 = vrot.slane %v83, 2
  %v85 = vadd.f32 %v83, %v84
  %v86 = vrot.slane %v85, 1
  %v87 = vadd.f32 %v85, %v86
  %88 = vset.pattern.permute.xlu0 9
  %89 = vperm.xlu0 %88, %v13
  %v90 = vpop.permute.xlu0 %89
  %v92 = vadd.f32 %v87, %v90
  %v94 = vrot.slane %v92, 7
  %vm96 = vcmask 1040384
  %v97 = vsel %vm96, %v76, %v94
  %98 = vst [vmem:[%s2] sm:$0x3] %v97
  // Predicated region
  $region10: #{_network_forward_jit.1} parent=0 // pred_check
    _
  $region11: #{_network_forward_jit.1} parent=0 // pred_check_branch
    %100 = sbr.rel (0) target = $region13
  $region12: #{_network_forward_jit.1} parent=0 // pred_region
    _
  $region13: #{_network_forward_jit.1} parent=0 // pred_fallthru
    _
  // Predicated region
  $region14: #{_network_forward_jit.1} parent=0 // pred_check
    _
  $region15: #{_network_forward_jit.1} parent=0 // pred_check_branch
    %102 = sbr.rel (0) target = $region17
  $region16: #{_network_forward_jit.1} parent=0 // pred_region
    _
  $region17: #{_network_forward_jit.1} parent=0 // pred_fallthru
    _

</llo_original>
